<compile_context>
chip_gen: v7x
topology: tpu7x:2x2x1
jax: 0.10.0
libtpu: 0.0.40
codegen_flags: <defaults>
</compile_context>

<pallas_src>
from functools import partial

import jax
import jax.numpy as jnp
from jax.experimental import pallas as pl
from jax.experimental.pallas import tpu as pltpu


# 2 inputs + 2 outputs, double-buffered -> 8 live f32 blocks.  24 MiB keeps
# the pipeline under the default 32 MiB scoped VMEM limit on every TPU
# generation (incl. v7x's 64 MiB physical VMEM).
_VMEM_PIPELINE_BUDGET = 24 * 1024 * 1024
_VMEM_LIMIT_BYTES = 32 * 1024 * 1024   # raises v5e's 16 MiB default; no-op on v6e/v7x
_MAX_ROW_TILE = 8192                   # keep per-step HBM traffic O(10 MiB)


def _pick_row_tile(R: int, L: int):
    """Rows (of lane width L, f32) per block.

    Returns (row_tile, R_padded).  VMEM-budgeted; prefers a tile that divides
    R exactly (skips the HBM padding/slicing passes); keeps >= 2 grid steps
    for megacore sharding when possible.
    """
    bytes_per_row = 4 * L
    max_tile = _VMEM_PIPELINE_BUDGET // (8 * bytes_per_row)
    max_tile = max(8, min(_MAX_ROW_TILE, (max_tile // 8) * 8))

    if R <= 8:
        # Single full-extent block (legal for any R); no padding needed.
        return R, R

    # Cap so there are >= 2 grid steps: pipelining + v7x megacore sharding.
    half = -(-R // 2)
    half = -(-half // 8) * 8
    cap = max(8, min(max_tile, half))

    if R % 8 == 0:
        # Prefer an exact divisor of R within [cap/2, cap]: no padding pass,
        # at most 2x the minimal number of grid steps.
        lo = max(8, (cap // 2 // 8) * 8)
        for t in range(cap, lo - 1, -8):
            if R % t == 0:
                return t, R

    # Fall back: pad the row count up to a multiple of the tile.
    return cap, -(-R // cap) * cap


def _complex_softmax_kernel(re_ref, im_ref, out_re_ref, out_im_ref, *,
                            seg_w: int, lane_w: int):
    re = re_ref[...]
    im = im_ref[...] + jnp.float32(1e-10)            # x.imag += 1e-10

    # |x| via rsqrt: absv = r2 * rsqrt(r2); also yields 1/|x| for free.
    r2 = re * re + im * im
    r2 = jnp.maximum(r2, jnp.float32(1e-36))         # guard exact cancellation (re=0, im=-1e-10)
    inv_abs = jax.lax.rsqrt(r2)
    absv = r2 * inv_abs

    if seg_w == lane_w:
        # Softmax axis spans the whole minor dim of the block.
        m = jnp.max(absv, axis=-1, keepdims=True)
        e = jnp.exp(absv - m)
        denom = jnp.sum(e, axis=-1, keepdims=True)
    else:
        # Lane-packed layout: each lane_w-wide row carries lane_w // seg_w
        # independent softmax rows of width seg_w (seg_w is a power of two).
        # Per-segment reductions are segmented cyclic all-reduces built from
        # log2(seg_w) XLU rotations (free slot vs. VPU/EUP).
        rows = absv.shape[0]
        lane = jax.lax.broadcasted_iota(jnp.int32, (rows, lane_w), 1)
        pos = jnp.bitwise_and(lane, seg_w - 1)        # lane % seg_w

        def seg_allreduce(v, op):
            k = 1
            while k < seg_w:
                same = pltpu.roll(v, k, axis=1)                      # v[l - k]
                wrap = pltpu.roll(v, (k - seg_w) % lane_w, axis=1)   # v[l - k + seg_w]
                v = op(v, jnp.where(pos >= k, same, wrap))
                k *= 2
            return v

        m = seg_allreduce(absv, jnp.maximum)          # per-segment max (broadcast)
        e = jnp.exp(absv - m)
        denom = seg_allreduce(e, jnp.add)             # per-segment sum (broadcast)

    # Approx reciprocal on the EUP + two Newton refinements on the VPU
    # (recovers ~f32 accuracy without a per-element EUP divide).
    inv_den = pl.reciprocal(denom, approx=True)
    inv_den = inv_den * (2.0 - denom * inv_den)
    inv_den = inv_den * (2.0 - denom * inv_den)

    # mag*cos(phase) = softmax(|x|) * re/|x| ;  mag*sin(phase) = ... * im/|x|
    scale = e * inv_den * inv_abs
    out_re_ref[...] = (re * scale).astype(out_re_ref.dtype)
    out_im_ref[...] = (im * scale).astype(out_im_ref.dtype)


def complex_softmax_planes(x_real, x_imag, *, vmem_limit_bytes=_VMEM_LIMIT_BYTES):
    """Complex softmax over dim=-1; returns (real, imag) float32 planes."""
    assert x_real.shape == x_imag.shape
    orig_shape = x_real.shape
    W = int(orig_shape[-1])
    rows = 1
    for d in orig_shape[:-1]:
        rows *= int(d)

    re2d = x_real.reshape(rows, W).astype(jnp.float32)
    im2d = x_imag.reshape(rows, W).astype(jnp.float32)

    # Lane packing: fold G consecutive rows into one 128-lane row when the
    # softmax width divides 128 (contiguous in HBM -> the reshape is free).
    if W < 128 and 128 % W == 0:
        G = 128 // W
    else:
        G = 1
    L = G * W                                   # lane width seen by the kernel
    R = -(-rows // G)                           # packed rows

    row_tile, R_pad = _pick_row_tile(R, L)
    rows_pad = R_pad * G

    if rows_pad != rows:
        # Zero padding is numerically safe (the +1e-10 prevents 0/0); padded
        # rows are sliced off below.
        pad = rows_pad - rows
        re2d = jnp.pad(re2d, ((0, pad), (0, 0)))
        im2d = jnp.pad(im2d, ((0, pad), (0, 0)))

    re_p = re2d.reshape(R_pad, L)
    im_p = im2d.reshape(R_pad, L)

    grid = (R_pad // row_tile,)
    spec = pl.BlockSpec((row_tile, L), lambda i: (i, 0))

    n = rows * W
    cost = pl.CostEstimate(flops=12 * n, transcendentals=3 * n,
                           bytes_accessed=16 * n)

    kernel = partial(_complex_softmax_kernel, seg_w=W, lane_w=L)

    out_re, out_im = pl.pallas_call(
        kernel,
        out_shape=(
            jax.ShapeDtypeStruct((R_pad, L), jnp.float32),
            jax.ShapeDtypeStruct((R_pad, L), jnp.float32),
        ),
        grid_spec=pltpu.PrefetchScalarGridSpec(
            num_scalar_prefetch=0,
            grid=grid,
            in_specs=[spec, spec],
            out_specs=[spec, spec],
        ),
        compiler_params=pltpu.CompilerParams(
            dimension_semantics=("parallel",),
            vmem_limit_bytes=vmem_limit_bytes,
        ),
        cost_estimate=cost,
    )(re_p, im_p)

    if rows_pad != rows:
        out_re = out_re.reshape(rows_pad, W)[:rows]
        out_im = out_im.reshape(rows_pad, W)[:rows]
    out_re = out_re.reshape(orig_shape)
    out_im = out_im.reshape(orig_shape)
    return out_re, out_im


def complex_softmax(x_real, x_imag, **kw):
    """Matches torch ComplexSoftMax: returns a complex64 array."""
    out_re, out_im = complex_softmax_planes(x_real, x_imag, **kw)
    # TODO(synk): consumers that accept split real/imag planes should call
    # complex_softmax_planes directly and skip this extra interleaving pass.
    return jax.lax.complex(out_re, out_im)


def _reference(x_real, x_imag):
    """Pure-JAX reference mirroring the PyTorch forward exactly."""
    im = x_imag + 1e-10
    absv = jnp.sqrt(x_real * x_real + im * im)
    mag = jax.nn.softmax(absv, axis=-1)
    phase = jnp.arctan2(im, x_real)
    return jax.lax.complex(mag * jnp.cos(phase), mag * jnp.sin(phase))


if __name__ == "__main__":
    key = jax.random.PRNGKey(0)
    kr, ki = jax.random.split(key)
    B, C, H, W = 2, 4, 16, 16
    x_real = jax.random.normal(kr, (B, C, H, W), dtype=jnp.float32)
    x_imag = jax.random.normal(ki, (B, C, H, W), dtype=jnp.float32)

    out = complex_softmax(x_real, x_imag)
    out = jax.block_until_ready(out)

    ref = _reference(x_real, x_imag)
    assert out.shape == (B, C, H, W) and out.dtype == jnp.complex64
    assert jnp.allclose(out.real, ref.real, atol=2e-5, rtol=2e-5)
    assert jnp.allclose(out.imag, ref.imag, atol=2e-5, rtol=2e-5)
    # softmax property: magnitudes along the softmax axis sum to 1
    assert jnp.allclose(jnp.sum(jnp.abs(out), axis=-1), 1.0, atol=1e-4)

    print("KERNEL_OK")
</pallas_src>

<mosaic_0001>
module attributes {stable_mosaic.version = 11 : i64} {
  func.func @_complex_softmax_kernel(%arg0: i32, %arg1: memref<8x128xf32, #tpu.memory_space<vmem>>, %arg2: memref<8x128xf32, #tpu.memory_space<vmem>>, %arg3: memref<8x128xf32, #tpu.memory_space<vmem>>, %arg4: memref<8x128xf32, #tpu.memory_space<vmem>>) attributes {dimension_semantics = [#tpu.dimension_semantics<parallel>], iteration_bounds = array<i64: 2>, scalar_prefetch = 0 : i64, scratch_operands = 0 : i64, tpu.core_type = #tpu.core_type<tc>, window_params = [{transform_indices = @transform_0, window_bounds = array<i64: 8, 128>}, {transform_indices = @transform_1, window_bounds = array<i64: 8, 128>}, {transform_indices = @transform_2, window_bounds = array<i64: 8, 128>}, {transform_indices = @transform_3, window_bounds = array<i64: 8, 128>}]} {
    %c0 = arith.constant 0 : index
    %c0_0 = arith.constant 0 : index
    %0 = vector.load %arg1[%c0, %c0_0] : memref<8x128xf32, #tpu.memory_space<vmem>>, vector<8x128xf32>
    %c0_1 = arith.constant 0 : index
    %c0_2 = arith.constant 0 : index
    %1 = vector.load %arg2[%c0_1, %c0_2] : memref<8x128xf32, #tpu.memory_space<vmem>>, vector<8x128xf32>
    %cst = arith.constant 1.000000e-10 : f32
    %2 = vector.broadcast %cst : f32 to vector<8x128xf32>
    %3 = arith.addf %1, %2 : vector<8x128xf32>
    %4 = arith.mulf %0, %0 : vector<8x128xf32>
    %5 = arith.mulf %3, %3 : vector<8x128xf32>
    %6 = arith.addf %4, %5 : vector<8x128xf32>
    %cst_3 = arith.constant 1.000000e-36 : f32
    %7 = vector.broadcast %cst_3 : f32 to vector<8x128xf32>
    %8 = arith.maximumf %6, %7 : vector<8x128xf32>
    %9 = math.rsqrt %8 : vector<8x128xf32>
    %10 = arith.mulf %8, %9 : vector<8x128xf32>
    %11 = tpu.iota {dimensions = array<i32: 1>} : vector<8x128xi32>
    %c15_i32 = arith.constant 15 : i32
    %12 = vector.broadcast %c15_i32 : i32 to vector<8x128xi32>
    %13 = arith.andi %11, %12 : vector<8x128xi32>
    %c1_i32 = arith.constant 1 : i32
    %14 = tpu.dynamic_rotate %10 by %c1_i32 dim 1 : vector<8x128xf32>, i32 -> vector<8x128xf32>
    %c113_i32 = arith.constant 113 : i32
    %15 = tpu.dynamic_rotate %10 by %c113_i32 dim 1 : vector<8x128xf32>, i32 -> vector<8x128xf32>
    %c1_i32_4 = arith.constant 1 : i32
    %16 = vector.broadcast %c1_i32_4 : i32 to vector<8x128xi32>
    %17 = arith.cmpi sge, %13, %16 : vector<8x128xi32>
    %18 = arith.select %17, %14, %15 : vector<8x128xi1>, vector<8x128xf32>
    %19 = arith.maximumf %10, %18 : vector<8x128xf32>
    %c2_i32 = arith.constant 2 : i32
    %20 = tpu.dynamic_rotate %19 by %c2_i32 dim 1 : vector<8x128xf32>, i32 -> vector<8x128xf32>
    %c114_i32 = arith.constant 114 : i32
    %21 = tpu.dynamic_rotate %19 by %c114_i32 dim 1 : vector<8x128xf32>, i32 -> vector<8x128xf32>
    %c2_i32_5 = arith.constant 2 : i32
    %22 = vector.broadcast %c2_i32_5 : i32 to vector<8x128xi32>
    %23 = arith.cmpi sge, %13, %22 : vector<8x128xi32>
    %24 = arith.select %23, %20, %21 : vector<8x128xi1>, vector<8x128xf32>
    %25 = arith.maximumf %19, %24 : vector<8x128xf32>
    %c4_i32 = arith.constant 4 : i32
    %26 = tpu.dynamic_rotate %25 by %c4_i32 dim 1 : vector<8x128xf32>, i32 -> vector<8x128xf32>
    %c116_i32 = arith.constant 116 : i32
    %27 = tpu.dynamic_rotate %25 by %c116_i32 dim 1 : vector<8x128xf32>, i32 -> vector<8x128xf32>
    %c4_i32_6 = arith.constant 4 : i32
    %28 = vector.broadcast %c4_i32_6 : i32 to vector<8x128xi32>
    %29 = arith.cmpi sge, %13, %28 : vector<8x128xi32>
    %30 = arith.select %29, %26, %27 : vector<8x128xi1>, vector<8x128xf32>
    %31 = arith.maximumf %25, %30 : vector<8x128xf32>
    %c8_i32 = arith.constant 8 : i32
    %32 = tpu.dynamic_rotate %31 by %c8_i32 dim 1 : vector<8x128xf32>, i32 -> vector<8x128xf32>
    %c120_i32 = arith.constant 120 : i32
    %33 = tpu.dynamic_rotate %31 by %c120_i32 dim 1 : vector<8x128xf32>, i32 -> vector<8x128xf32>
    %c8_i32_7 = arith.constant 8 : i32
    %34 = vector.broadcast %c8_i32_7 : i32 to vector<8x128xi32>
    %35 = arith.cmpi sge, %13, %34 : vector<8x128xi32>
    %36 = arith.select %35, %32, %33 : vector<8x128xi1>, vector<8x128xf32>
    %37 = arith.maximumf %31, %36 : vector<8x128xf32>
    %38 = arith.subf %10, %37 : vector<8x128xf32>
    %39 = math.exp %38 : vector<8x128xf32>
    %c1_i32_8 = arith.constant 1 : i32
    %40 = tpu.dynamic_rotate %39 by %c1_i32_8 dim 1 : vector<8x128xf32>, i32 -> vector<8x128xf32>
    %c113_i32_9 = arith.constant 113 : i32
    %41 = tpu.dynamic_rotate %39 by %c113_i32_9 dim 1 : vector<8x128xf32>, i32 -> vector<8x128xf32>
    %c1_i32_10 = arith.constant 1 : i32
    %42 = vector.broadcast %c1_i32_10 : i32 to vector<8x128xi32>
    %43 = arith.cmpi sge, %13, %42 : vector<8x128xi32>
    %44 = arith.select %43, %40, %41 : vector<8x128xi1>, vector<8x128xf32>
    %45 = arith.addf %39, %44 : vector<8x128xf32>
    %c2_i32_11 = arith.constant 2 : i32
    %46 = tpu.dynamic_rotate %45 by %c2_i32_11 dim 1 : vector<8x128xf32>, i32 -> vector<8x128xf32>
    %c114_i32_12 = arith.constant 114 : i32
    %47 = tpu.dynamic_rotate %45 by %c114_i32_12 dim 1 : vector<8x128xf32>, i32 -> vector<8x128xf32>
    %c2_i32_13 = arith.constant 2 : i32
    %48 = vector.broadcast %c2_i32_13 : i32 to vector<8x128xi32>
    %49 = arith.cmpi sge, %13, %48 : vector<8x128xi32>
    %50 = arith.select %49, %46, %47 : vector<8x128xi1>, vector<8x128xf32>
    %51 = arith.addf %45, %50 : vector<8x128xf32>
    %c4_i32_14 = arith.constant 4 : i32
    %52 = tpu.dynamic_rotate %51 by %c4_i32_14 dim 1 : vector<8x128xf32>, i32 -> vector<8x128xf32>
    %c116_i32_15 = arith.constant 116 : i32
    %53 = tpu.dynamic_rotate %51 by %c116_i32_15 dim 1 : vector<8x128xf32>, i32 -> vector<8x128xf32>
    %c4_i32_16 = arith.constant 4 : i32
    %54 = vector.broadcast %c4_i32_16 : i32 to vector<8x128xi32>
    %55 = arith.cmpi sge, %13, %54 : vector<8x128xi32>
    %56 = arith.select %55, %52, %53 : vector<8x128xi1>, vector<8x128xf32>
    %57 = arith.addf %51, %56 : vector<8x128xf32>
    %c8_i32_17 = arith.constant 8 : i32
    %58 = tpu.dynamic_rotate %57 by %c8_i32_17 dim 1 : vector<8x128xf32>, i32 -> vector<8x128xf32>
    %c120_i32_18 = arith.constant 120 : i32
    %59 = tpu.dynamic_rotate %57 by %c120_i32_18 dim 1 : vector<8x128xf32>, i32 -> vector<8x128xf32>
    %c8_i32_19 = arith.constant 8 : i32
    %60 = vector.broadcast %c8_i32_19 : i32 to vector<8x128xi32>
    %61 = arith.cmpi sge, %13, %60 : vector<8x128xi32>
    %62 = arith.select %61, %58, %59 : vector<8x128xi1>, vector<8x128xf32>
    %63 = arith.addf %57, %62 : vector<8x128xf32>
    %64 = tpu.reciprocal %63 {approx = true} : vector<8x128xf32> -> vector<8x128xf32>
    %65 = arith.mulf %63, %64 : vector<8x128xf32>
    %cst_20 = arith.constant 2.000000e+00 : f32
    %66 = vector.broadcast %cst_20 : f32 to vector<8x128xf32>
    %67 = arith.subf %66, %65 : vector<8x128xf32>
    %68 = arith.mulf %64, %67 : vector<8x128xf32>
    %69 = arith.mulf %63, %68 : vector<8x128xf32>
    %cst_21 = arith.constant 2.000000e+00 : f32
    %70 = vector.broadcast %cst_21 : f32 to vector<8x128xf32>
    %71 = arith.subf %70, %69 : vector<8x128xf32>
    %72 = arith.mulf %68, %71 : vector<8x128xf32>
    %73 = arith.mulf %39, %72 : vector<8x128xf32>
    %74 = arith.mulf %73, %9 : vector<8x128xf32>
    %75 = arith.mulf %0, %74 : vector<8x128xf32>
    %c0_22 = arith.constant 0 : index
    %c0_23 = arith.constant 0 : index
    %76 = vector.load %arg3[%c0_22, %c0_23] : memref<8x128xf32, #tpu.memory_space<vmem>>, vector<8x128xf32>
    tpu.vector_store %arg3[%c0_22, %c0_23], %75 {strides = array<i32>} : memref<8x128xf32, #tpu.memory_space<vmem>>, vector<8x128xf32>,
    %77 = arith.mulf %3, %74 : vector<8x128xf32>
    %c0_24 = arith.constant 0 : index
    %c0_25 = arith.constant 0 : index
    %78 = vector.load %arg4[%c0_24, %c0_25] : memref<8x128xf32, #tpu.memory_space<vmem>>, vector<8x128xf32>
    tpu.vector_store %arg4[%c0_24, %c0_25], %77 {strides = array<i32>} : memref<8x128xf32, #tpu.memory_space<vmem>>, vector<8x128xf32>,
    return
  }
  func.func @transform_0(%arg0: i32) -> (i32, i32) {
    %c0_i32 = arith.constant 0 : i32
    %c0_i32_0 = arith.constant 0 : i32
    return %arg0, %c0_i32 : i32, i32
  }
  func.func @transform_1(%arg0: i32) -> (i32, i32) {
    %c0_i32 = arith.constant 0 : i32
    %c0_i32_0 = arith.constant 0 : i32
    return %arg0, %c0_i32 : i32, i32
  }
  func.func @transform_2(%arg0: i32) -> (i32, i32) {
    %c0_i32 = arith.constant 0 : i32
    %c0_i32_0 = arith.constant 0 : i32
    return %arg0, %c0_i32 : i32, i32
  }
  func.func @transform_3(%arg0: i32) -> (i32, i32) {
    %c0_i32 = arith.constant 0 : i32
    %c0_i32_0 = arith.constant 0 : i32
    return %arg0, %c0_i32 : i32, i32
  }
}

</mosaic_0001>

<llo_original>
// kernel: tpu_custom_call.1
$region0: #{tpu_custom_call.1}
  #allocation0 [shape = 'u32[]', space=smem, size = 0x4, offset = 0x4, fixed_abs, tag = 'smem constant byte address 0x4 - core index']
  #allocation1 [shape = 'u32[144,128]{1,0:T(1,128)}', space=vmem, size = 0x12000, scoped, tag = 'internal scratch']
  %s0 = inlined_call_operand.hbm [shape: f32[16,128], index: 0, kind: input, shape index: {}]
  %s1 = inlined_call_operand.hbm [shape: f32[16,128], index: 1, kind: input, shape index: {}]
  %s2 = inlined_call_operand.hbm [shape: f32[16,128], index: 2, kind: output, shape index: {0}]
  %s3 = inlined_call_operand.hbm [shape: f32[16,128], index: 3, kind: output, shape index: {1}]
  %4 = xla_tuple %s2, %s3
  %s5 = sld [smem:[#allocation0]]
  $region57: #{tpu_custom_call.1} parent=0
    _
  %s7 = ssub.s32 1, %s5
  %s8 = scalar_select 0, %s7, %s5
  $region1: #{tpu_custom_call.1} parent=0
    #allocation2 [shape = 'u8[8192]{0}', space=vmem, size = 0x2000, scoped, tag = 'input window, operand 0']
    #allocation3 [shape = 's32[2]{0}', space=sflag, size = 0x8, scoped, tag = 'scoped memory for tpu_custom_call.1']
    #allocation4 [shape = 's32[2]{0}', space=sflag, size = 0x8, scoped, tag = 'scoped memory for tpu_custom_call.1']
    #allocation5 [shape = 'u8[8192]{0}', space=vmem, size = 0x2000, scoped, tag = 'input window, operand 1']
    #allocation6 [shape = 's32[2]{0}', space=sflag, size = 0x8, scoped, tag = 'scoped memory for tpu_custom_call.1']
    #allocation7 [shape = 'u8[8192]{0}', space=vmem, size = 0x2000, scoped, tag = 'output window, operand 0']
    #allocation8 [shape = 'u8[8192]{0}', space=vmem, size = 0x2000, scoped, tag = 'output window, operand 1']
    #allocation9 [shape = 's32[2]{0}', space=sflag, size = 0x8, scoped, tag = 'scoped memory for tpu_custom_call.1']
    %9 = vsyncpa [#allocation3], 0
    %s10 = scalar_lea.sflag [#allocation3], 1
    %11 = vsyncpa %s10, 0
    %12 = vsyncpa [#allocation6], 0
    %s13 = scalar_lea.sflag [#allocation6], 1
    %14 = vsyncpa %s13, 0
    %15 = vsyncpa [#allocation4], 0
    %s16 = scalar_lea.sflag [#allocation4], 1
    %17 = vsyncpa %s16, 0
    %18 = vsyncpa [#allocation9], 0
    %s19 = scalar_lea.sflag [#allocation9], 1
    %20 = vsyncpa %s19, 0
    loop: start=0, step=1, limit=4
    $region2: #{tpu_custom_call.1} parent=1 // loop_pre_header
      _
    $region3: #{tpu_custom_call.1} parent=1 // loop_header
      %s22 = sphi 0, %s26
      %p23 = scmp.ge.s32.totalorder %s22, 4
      %s32 = sphi 0, %s34
      %s35 = sphi 0, %s32
      %s36 = sphi 0, %s35
      %s52 = sphi 0, %s36
      %s58 = sphi 0, %s60
      %s61 = sphi 0, %s58
      %s62 = sphi 0, %s61
      %s78 = sphi 0, %s62
      %s84 = sphi 0, %s86
      %s87 = sphi 0, %s84
      %s88 = sphi 0, %s87
      %s104 = sphi 0, %s88
      %s110 = sphi 0, %s112
      %s113 = sphi 0, %s110
      %s114 = sphi 0, %s113
      %s130 = sphi 0, %s114
    $region4: #{tpu_custom_call.1} parent=1 // loop_header_branch
      %25 = sbr.rel (%p23) target = $region8
    $region5: #{tpu_custom_call.1} parent=1 // loop_body
      %s27 = ssub.s32 %s22, 1
      %s28 = ssub.s32 %s22, 2
      %s29 = sadd.s32 %s22, 1
      %s30 = ssub.s32 %s22, %s29
      %p31 = scmp.eq.s32.totalorder %s30, 0
      %s33 = sadd.s32 %s32, 1
      %s34 = scalar_select %p31, %s32, %s33
      %p37 = pneg %p31
      %p38 = scmp.eq.s32.totalorder %s22, 1
      %p39 = por %p37, %p38
      %p40 = scmp.ne.s32.totalorder %s32, %s35
      %p41 = scmp.eq.s32.totalorder %s22, 0
      %p42 = por %p40, %p41
      %p43 = scmp.ne.s32.totalorder %s32, %s35
      %p44 = scmp.eq.s32.totalorder %s27, 1
      %p45 = por %p43, %p44
      %p46 = scmp.ne.s32.totalorder %s35, %s36
      %p47 = scmp.eq.s32.totalorder %s27, 0
      %p48 = por %p46, %p47
      %p49 = scmp.ne.s32.totalorder %s35, %s36
      %p50 = scmp.eq.s32.totalorder %s28, 1
      %p51 = por %p49, %p50
      %p53 = scmp.ne.s32.totalorder %s36, %s52
      %p54 = scmp.eq.s32.totalorder %s28, 0
      %p55 = por %p53, %p54
      %s56 = ssub.s32 %s22, %s29
      %p57 = scmp.eq.s32.totalorder %s56, 0
      %s59 = sadd.s32 %s58, 1
      %s60 = scalar_select %p57, %s58, %s59
      %p63 = pneg %p57
      %p64 = scmp.eq.s32.totalorder %s22, 1
      %p65 = por %p63, %p64
      %p66 = scmp.ne.s32.totalorder %s58, %s61
      %p67 = scmp.eq.s32.totalorder %s22, 0
      %p68 = por %p66, %p67
      %p69 = scmp.ne.s32.totalorder %s58, %s61
      %p70 = scmp.eq.s32.totalorder %s27, 1
      %p71 = por %p69, %p70
      %p72 = scmp.ne.s32.totalorder %s61, %s62
      %p73 = scmp.eq.s32.totalorder %s27, 0
      %p74 = por %p72, %p73
      %p75 = scmp.ne.s32.totalorder %s61, %s62
      %p76 = scmp.eq.s32.totalorder %s28, 1
      %p77 = por %p75, %p76
      %p79 = scmp.ne.s32.totalorder %s62, %s78
      %p80 = scmp.eq.s32.totalorder %s28, 0
      %p81 = por %p79, %p80
      %s82 = ssub.s32 %s22, %s29
      %p83 = scmp.eq.s32.totalorder %s82, 0
      %s85 = sadd.s32 %s84, 1
      %s86 = scalar_select %p83, %s84, %s85
      %p89 = pneg %p83
      %p90 = scmp.eq.s32.totalorder %s22, 1
      %p91 = por %p89, %p90
      %p92 = scmp.ne.s32.totalorder %s84, %s87
      %p93 = scmp.eq.s32.totalorder %s22, 0
      %p94 = por %p92, %p93
      %p95 = scmp.ne.s32.totalorder %s84, %s87
      %p96 = scmp.eq.s32.totalorder %s27, 1
      %p97 = por %p95, %p96
      %p98 = scmp.ne.s32.totalorder %s87, %s88
      %p99 = scmp.eq.s32.totalorder %s27, 0
      %p100 = por %p98, %p99
      %p101 = scmp.ne.s32.totalorder %s87, %s88
      %p102 = scmp.eq.s32.totalorder %s28, 1
      %p103 = por %p101, %p102
      %p105 = scmp.ne.s32.totalorder %s88, %s104
      %p106 = scmp.eq.s32.totalorder %s28, 0
      %p107 = por %p105, %p106
      %s108 = ssub.s32 %s22, %s29
      %p109 = scmp.eq.s32.totalorder %s108, 0
      %s111 = sadd.s32 %s110, 1
      %s112 = scalar_select %p109, %s110, %s111
      %p115 = pneg %p109
      %p116 = scmp.eq.s32.totalorder %s22, 1
      %p117 = por %p115, %p116
      %p118 = scmp.ne.s32.totalorder %s110, %s113
      %p119 = scmp.eq.s32.totalorder %s22, 0
      %p120 = por %p118, %p119
      %p121 = scmp.ne.s32.totalorder %s110, %s113
      %p122 = scmp.eq.s32.totalorder %s27, 1
      %p123 = por %p121, %p122
      %p124 = scmp.ne.s32.totalorder %s113, %s114
      %p125 = scmp.eq.s32.totalorder %s27, 0
      %p126 = por %p124, %p125
      %p127 = scmp.ne.s32.totalorder %s113, %s114
      %p128 = scmp.eq.s32.totalorder %s28, 1
      %p129 = por %p127, %p128
      %p131 = scmp.ne.s32.totalorder %s114, %s130
      %p132 = scmp.eq.s32.totalorder %s28, 0
      %p133 = por %p131, %p132
      %p134 = scmp.le.s32.totalorder 1, %s22
      %p135 = scmp.lt.s32.totalorder %s22, 3
      %p136 = pnand %p134, %p135
      %p137 = pneg %p136
      // Predicated region
      $region9: #{tpu_custom_call.1} parent=5 // pred_check
        _
      $region10: #{tpu_custom_call.1} parent=5 // pred_check_branch
        %139 = sbr.rel (%p136) target = $region12
      $region11: #{tpu_custom_call.1} parent=5 // pred_region
        %s140 = ssub.s32 %s22, 1
      $region12: #{tpu_custom_call.1} parent=5 // pred_fallthru
        _
      %p141 = scmp.lt.s32.totalorder %s22, 2
      // Predicated region
      $region13: #{tpu_custom_call.1} parent=5 // pred_check
        %p142 = pneg %p141
      $region14: #{tpu_custom_call.1} parent=5 // pred_check_branch
        %144 = sbr.rel (%p142) target = $region16
      $region15: #{tpu_custom_call.1} parent=5 // pred_region
        // Predicated region
        $region17: #{tpu_custom_call.1} parent=15 // pred_check
          %p145 = pneg %p42
        $region18: #{tpu_custom_call.1} parent=15 // pred_check_branch
          %147 = sbr.rel (%p145) target = $region20
        $region19: #{tpu_custom_call.1} parent=15 // pred_region
          %s148 = sand.u32 %s32, 1
          %s149 = scalar_lea.sflag [#allocation3], %s148
          %s150 = sand.u32 %s32, 1
          %s151 = smul.addr %s150, 8
          %s152 = scalar_lea.vmem [#allocation2], %s151
          %s154 = ssub.s32 128, 128
          %155 = vsyncadd %s149, %s154
          %s156 = smul.addr %s22, 128
          %s157 = scalar_lea.hbm %s0, %s156
          %s159 = sshll.u32 %s152, 4
          %s160 = int_to_ptr.vmem [resolvable:$true] %s159
          %162 = dma.hbm_to_vmem [thread:$0]  %s157, 128, %s160, %s149
        $region20: #{tpu_custom_call.1} parent=15 // pred_fallthru
          _
        // Predicated region
        $region21: #{tpu_custom_call.1} parent=15 // pred_check
          %p163 = pneg %p68
        $region22: #{tpu_custom_call.1} parent=15 // pred_check_branch
          %165 = sbr.rel (%p163) target = $region24
        $region23: #{tpu_custom_call.1} parent=15 // pred_region
          %s166 = sand.u32 %s58, 1
          %s167 = scalar_lea.sflag [#allocation6], %s166
          %s168 = sand.u32 %s58, 1
          %s169 = smul.addr %s168, 8
          %s170 = scalar_lea.vmem [#allocation5], %s169
          %s172 = ssub.s32 128, 128
          %173 = vsyncadd %s167, %s172
          %s174 = smul.addr %s22, 128
          %s175 = scalar_lea.hbm %s1, %s174
          %s177 = sshll.u32 %s170, 4
          %s178 = int_to_ptr.vmem [resolvable:$true] %s177
          %180 = dma.hbm_to_vmem [thread:$0]  %s175, 128, %s178, %s167
        $region24: #{tpu_custom_call.1} parent=15 // pred_fallthru
          _
      $region16: #{tpu_custom_call.1} parent=5 // pred_fallthru
        _
      %p181 = scmp.le.s32.totalorder 1, %s22
      %p182 = scmp.lt.s32.totalorder %s22, 3
      %p183 = pnand %p181, %p182
      %p184 = pneg %p183
      // Predicated region
      $region25: #{tpu_custom_call.1} parent=5 // pred_check
        _
      $region26: #{tpu_custom_call.1} parent=5 // pred_check_branch
        %186 = sbr.rel (%p183) target = $region28
      $region27: #{tpu_custom_call.1} parent=5 // pred_region
        %s187 = ssub.s32 %s22, 1
        %s188 = sand.u32 %s35, 1
        %s189 = scalar_lea.sflag [#allocation3], %s188
        %s190 = sand.u32 %s35, 1
        %s191 = smul.addr %s190, 8
        %s192 = scalar_lea.vmem [#allocation2], %s191
        // Predicated region
        $region29: #{tpu_custom_call.1} parent=27 // pred_check
          %p193 = pneg %p48
        $region30: #{tpu_custom_call.1} parent=27 // pred_check_branch
          %195 = sbr.rel (%p193) target = $region32
        $region31: #{tpu_custom_call.1} parent=27 // pred_region
          %196 = dma.done %s189, 128
        $region32: #{tpu_custom_call.1} parent=27 // pred_fallthru
          _
        %s197 = sand.u32 %s61, 1
        %s198 = scalar_lea.sflag [#allocation6], %s197
        %s199 = sand.u32 %s61, 1
        %s200 = smul.addr %s199, 8
        %s201 = scalar_lea.vmem [#allocation5], %s200
        // Predicated region
        $region33: #{tpu_custom_call.1} parent=27 // pred_check
          %p202 = pneg %p74
        $region34: #{tpu_custom_call.1} parent=27 // pred_check_branch
          %204 = sbr.rel (%p202) target = $region36
        $region35: #{tpu_custom_call.1} parent=27 // pred_region
          %205 = dma.done %s198, 128
        $region36: #{tpu_custom_call.1} parent=27 // pred_fallthru
          _
        %s206 = sand.u32 %s35, 1
        %s207 = scalar_lea.sflag [#allocation3], %s206
        %s208 = sand.u32 %s35, 1
        %s209 = smul.addr %s208, 8
        %s210 = scalar_lea.vmem [#allocation2], %s209
        %p211 = pneg %p48
        %p212 = pneg %p45
        %s213 = sand.u32 %s61, 1
        %s214 = scalar_lea.sflag [#allocation6], %s213
        %s215 = sand.u32 %s61, 1
        %s216 = smul.addr %s215, 8
        %s217 = scalar_lea.vmem [#allocation5], %s216
        %p218 = pneg %p74
        %p219 = pneg %p71
        %p220 = pneg %p100
        %p221 = pneg %p97
        %s222 = sand.u32 %s87, 1
        %s223 = scalar_lea.sflag [#allocation4], %s222
        %s224 = sand.u32 %s87, 1
        %s225 = smul.addr %s224, 8
        %s226 = scalar_lea.vmem [#allocation7], %s225
        %p227 = pneg %p126
        %p228 = pneg %p123
        %s229 = sand.u32 %s113, 1
        %s230 = scalar_lea.sflag [#allocation9], %s229
        %s231 = sand.u32 %s113, 1
        %s232 = smul.addr %s231, 8
        %s233 = scalar_lea.vmem [#allocation8], %s232
        %v234 = vld [vmem:[%s192] sm:$0xff]
        %v235 = vld [vmem:[%s201] sm:$0xff]
        %v236 = vadd.f32 %v235, 1e-10
        %v237 = vmul.f32 %v234, %v234
        %v238 = vmul.f32 %v236, %v236
        %v239 = vadd.f32 %v237, %v238
        %v240 = vmax.f32 %v239, 1e-36
        %v241 = vrsqrt.pop %v240
        %v242 = vmul.f32 %v240, %v241
        %v243 = vlaneseq
        %v244 = vand.u32 %v243, 127
        %v245 = vand.u32 %v244, 15
        %246 = vrot.lane.b32.xlu0 %v242, 1
        %v247 = vpop.permute.xlu0 %246
        %248 = vrot.lane.b32.xlu0 %v242, 113
        %v249 = vpop.permute.xlu0 %248
        %vm250 = vcmp.ge.s32.totalorder %v245, 1
        %v251 = vsel %vm250, %v247, %v249
        %v252 = vmax.f32 %v242, %v251
        %253 = vrot.lane.b32.xlu0 %v252, 2
        %v254 = vpop.permute.xlu0 %253
        %255 = vrot.lane.b32.xlu0 %v252, 114
        %v256 = vpop.permute.xlu0 %255
        %vm257 = vcmp.ge.s32.totalorder %v245, 2
        %v258 = vsel %vm257, %v254, %v256
        %v259 = vmax.f32 %v252, %v258
        %260 = vrot.lane.b32.xlu0 %v259, 4
        %v261 = vpop.permute.xlu0 %260
        %262 = vrot.lane.b32.xlu0 %v259, 116
        %v263 = vpop.permute.xlu0 %262
        %vm264 = vcmp.ge.s32.totalorder %v245, 4
        %v265 = vsel %vm264, %v261, %v263
        %v266 = vmax.f32 %v259, %v265
        %267 = vrot.lane.b32.xlu0 %v266, 8
        %v268 = vpop.permute.xlu0 %267
        %269 = vrot.lane.b32.xlu0 %v266, 120
        %v270 = vpop.permute.xlu0 %269
        %vm271 = vcmp.ge.s32.totalorder %v245, 8
        %v272 = vsel %vm271, %v268, %v270
        %v273 = vmax.f32 %v266, %v272
        %v274 = vsub.f32 %v242, %v273
        %v275 = vmul.f32 %v274, 1.442695
        %v276 = vpow.pop %v275
        %277 = vrot.lane.b32.xlu0 %v276, 1
        %v278 = vpop.permute.xlu0 %277
        %279 = vrot.lane.b32.xlu0 %v276, 113
        %v280 = vpop.permute.xlu0 %279
        %v281 = vsel %vm250, %v278, %v280
        %v282 = vadd.f32 %v276, %v281
        %283 = vrot.lane.b32.xlu0 %v282, 2
        %v284 = vpop.permute.xlu0 %283
        %285 = vrot.lane.b32.xlu0 %v282, 114
        %v286 = vpop.permute.xlu0 %285
        %v287 = vsel %vm257, %v284, %v286
        %v288 = vadd.f32 %v282, %v287
        %289 = vrot.lane.b32.xlu0 %v288, 4
        %v290 = vpop.permute.xlu0 %289
        %291 = vrot.lane.b32.xlu0 %v288, 116
        %v292 = vpop.permute.xlu0 %291
        %v293 = vsel %vm264, %v290, %v292
        %v294 = vadd.f32 %v288, %v293
        %295 = vrot.lane.b32.xlu0 %v294, 8
        %v296 = vpop.permute.xlu0 %295
        %297 = vrot.lane.b32.xlu0 %v294, 120
        %v298 = vpop.permute.xlu0 %297
        %v299 = vsel %vm271, %v296, %v298
        %v300 = vadd.f32 %v294, %v299
        %v301 = vrcp.pop %v300
        %v302 = vmul.f32 %v300, %v301
        %v303 = vsub.f32 2.0, %v302
        %v304 = vmul.f32 %v301, %v303
        %v305 = vmul.f32 %v300, %v304
        %v306 = vsub.f32 2.0, %v305
        %v307 = vmul.f32 %v304, %v306
        %v308 = vmul.f32 %v276, %v307
        %v309 = vmul.f32 %v308, %v241
        %v310 = vmul.f32 %v234, %v309
        %311 = vst [vmem:[%s226] sm:$0xff] %v310
        %v312 = vmul.f32 %v236, %v309
        %313 = vst [vmem:[%s233] sm:$0xff] %v312
        %s314 = sand.u32 %s87, 1
        %s315 = scalar_lea.sflag [#allocation4], %s314
        %s316 = sand.u32 %s87, 1
        %s317 = smul.addr %s316, 8
        %s318 = scalar_lea.vmem [#allocation7], %s317
        %s319 = sand.u32 %s113, 1
        %s320 = scalar_lea.sflag [#allocation9], %s319
        %s321 = sand.u32 %s113, 1
        %s322 = smul.addr %s321, 8
        %s323 = scalar_lea.vmem [#allocation8], %s322
        // Predicated region
        $region37: #{tpu_custom_call.1} parent=27 // pred_check
          %p324 = pneg %p97
        $region38: #{tpu_custom_call.1} parent=27 // pred_check_branch
          %326 = sbr.rel (%p324) target = $region40
        $region39: #{tpu_custom_call.1} parent=27 // pred_region
          %s328 = ssub.s32 128, 128
          %329 = vsyncadd %s315, %s328
          %s330 = smul.addr %s27, 128
          %s331 = scalar_lea.hbm %s2, %s330
          %s333 = sshll.u32 %s318, 4
          %s334 = int_to_ptr.vmem [resolvable:$true] %s333
          %336 = dma.vmem_to_hbm [thread:$0]  %s334, 128, %s331, %s315
        $region40: #{tpu_custom_call.1} parent=27 // pred_fallthru
          _
        // Predicated region
        $region41: #{tpu_custom_call.1} parent=27 // pred_check
          %p337 = pneg %p123
        $region42: #{tpu_custom_call.1} parent=27 // pred_check_branch
          %339 = sbr.rel (%p337) target = $region44
        $region43: #{tpu_custom_call.1} parent=27 // pred_region
          %s341 = ssub.s32 128, 128
          %342 = vsyncadd %s320, %s341
          %s343 = smul.addr %s27, 128
          %s344 = scalar_lea.hbm %s3, %s343
          %s346 = sshll.u32 %s323, 4
          %s347 = int_to_ptr.vmem [resolvable:$true] %s346
          %349 = dma.vmem_to_hbm [thread:$0]  %s347, 128, %s344, %s320
        $region44: #{tpu_custom_call.1} parent=27 // pred_fallthru
          _
      $region28: #{tpu_custom_call.1} parent=5 // pred_fallthru
        _
      %p350 = scmp.le.s32.totalorder 2, %s22
      // Predicated region
      $region45: #{tpu_custom_call.1} parent=5 // pred_check
        %p351 = pneg %p350
      $region46: #{tpu_custom_call.1} parent=5 // pred_check_branch
        %353 = sbr.rel (%p351) target = $region48
      $region47: #{tpu_custom_call.1} parent=5 // pred_region
        %s354 = ssub.s32 %s22, 2
        // Predicated region
        $region49: #{tpu_custom_call.1} parent=47 // pred_check
          %p355 = pneg %p103
        $region50: #{tpu_custom_call.1} parent=47 // pred_check_branch
          %357 = sbr.rel (%p355) target = $region52
        $region51: #{tpu_custom_call.1} parent=47 // pred_region
          %s358 = sand.u32 %s88, 1
          %s359 = scalar_lea.sflag [#allocation4], %s358
          %s360 = sand.u32 %s88, 1
          %s361 = smul.addr %s360, 8
          %s362 = scalar_lea.vmem [#allocation7], %s361
          %363 = dma.done %s359, 128
        $region52: #{tpu_custom_call.1} parent=47 // pred_fallthru
          _
        // Predicated region
        $region53: #{tpu_custom_call.1} parent=47 // pred_check
          %p364 = pneg %p129
        $region54: #{tpu_custom_call.1} parent=47 // pred_check_branch
          %366 = sbr.rel (%p364) target = $region56
        $region55: #{tpu_custom_call.1} parent=47 // pred_region
          %s367 = sand.u32 %s114, 1
          %s368 = scalar_lea.sflag [#allocation9], %s367
          %s369 = sand.u32 %s114, 1
          %s370 = smul.addr %s369, 8
          %s371 = scalar_lea.vmem [#allocation8], %s370
          %372 = dma.done %s368, 128
        $region56: #{tpu_custom_call.1} parent=47 // pred_fallthru
          _
      $region48: #{tpu_custom_call.1} parent=5 // pred_fallthru
        _
    $region6: #{tpu_custom_call.1} parent=1 // loop_footer
      %s26 = sadd.s32 1, %s22
    $region7: #{tpu_custom_call.1} parent=1 // loop_footer_branch
      %21 = sbr.rel target = $region3
    $region8: #{tpu_custom_call.1} parent=1 // loop_exit
      _
    %373 = vsyncpa [#allocation3], 1
    %s374 = scalar_lea.sflag [#allocation3], 1
    %375 = vsyncpa %s374, 1
    %376 = vsyncpa [#allocation6], 1
    %s377 = scalar_lea.sflag [#allocation6], 1
    %378 = vsyncpa %s377, 1
    %379 = vsyncpa [#allocation4], 1
    %s380 = scalar_lea.sflag [#allocation4], 1
    %381 = vsyncpa %s380, 1
    %382 = vsyncpa [#allocation9], 1
    %s383 = scalar_lea.sflag [#allocation9], 1
    %384 = vsyncpa %s383, 1

</llo_original>
